<compile_context>
chip_gen: v5e
topology: v5e:2x2
jax: 0.10.0
libtpu: 0.0.40
codegen_flags: <defaults>
</compile_context>

<pallas_src>
import functools

import jax
import jax.numpy as jnp
from jax.experimental import pallas as pl
from jax.experimental.pallas import tpu as pltpu

IN_F = 28 * 28          # 784
H1, H2 = 300, 100
H1_PAD, H2_PAD, OUT_PAD = 384, 128, 128   # lane-multiple padded feature dims


def _round_up(x, m):
    return (x + m - 1) // m * m


# --------------------------------------------------------------------------
# Kernel: fused 3-layer MLP, z already folded into bf16 weights.
# --------------------------------------------------------------------------
def mlp_mnist_kernel(x_ref,
                     w1_ref, b1_ref,
                     w2_ref, b2_ref,
                     w3_ref, b3_ref,
                     out_ref):
    # fc1 + relu
    x = x_ref[...].astype(jnp.bfloat16)                       # (tb, 784)
    h1 = jnp.dot(x, w1_ref[...],
                 preferred_element_type=jnp.float32) + b1_ref[...]
    h1 = jnp.maximum(h1, 0.0).astype(jnp.bfloat16)            # (tb, 384)

    # fc2 + relu
    h2 = jnp.dot(h1, w2_ref[...],
                 preferred_element_type=jnp.float32) + b2_ref[...]
    h2 = jnp.maximum(h2, 0.0).astype(jnp.bfloat16)            # (tb, 128)

    # fc3 (logits, padded to 128 lanes; sliced in the wrapper)
    out_ref[...] = jnp.dot(h2, w3_ref[...],
                           preferred_element_type=jnp.float32) + b3_ref[...]


# --------------------------------------------------------------------------
# Parameter conversion: fold z, transpose, zero-pad, cast weights to bf16.
# --------------------------------------------------------------------------
def convert_params_for_kernel(params):
    """params: list of (z (1,in), w (out,in), b (out,)) f32 per layer.
    Returns list of (w_padded_bf16 (in_pad, out_pad), b_padded_f32 (1, out_pad)).
    Padded rows/cols and padded bias entries are zero, so padded hidden units
    stay exactly 0 through ReLU and never contribute downstream."""
    in_pads = [IN_F, H1_PAD, H2_PAD]
    out_pads = [H1_PAD, H2_PAD, OUT_PAD]
    kparams = []
    for (z, w, b), dip, dop in zip(params, in_pads, out_pads):
        dout, din = w.shape
        # (x*z) @ w.T == x @ ((w*z).T)  -> exact fold of z into the weights.
        w_folded_t = (w * z).T                                  # (din, dout) f32
        w_pad = jnp.zeros((dip, dop), jnp.float32).at[:din, :dout].set(w_folded_t)
        b_pad = jnp.zeros((1, dop), jnp.float32).at[0, :dout].set(b)
        kparams.append((w_pad.astype(jnp.bfloat16), b_pad))
    return kparams


# --------------------------------------------------------------------------
# Wrapper: batch-tiled grid, weights resident in VMEM across grid steps.
# --------------------------------------------------------------------------
@functools.partial(jax.jit, static_argnames=("num_classes", "tile_b"))
def mlp_mnist_forward(x_nchw, kernel_params, num_classes=10, tile_b=256):
    """x_nchw: (B, 1, 28, 28) float32. Returns (B, num_classes) float32 logits."""
    B = x_nchw.shape[0]
    x = x_nchw.reshape(B, IN_F)                                 # x.view(-1, 784)

    # Batch tile: up to 256 rows per grid step (fills the MXU M dimension on
    # v6e/v7x); small batches just round up to a sublane multiple of 8.
    tb = min(tile_b, _round_up(B, 8))
    Bp = _round_up(B, tb)
    if Bp != B:
        x = jnp.pad(x, ((0, Bp - B), (0, 0)))

    (w1, b1), (w2, b2), (w3, b3) = kernel_params

    flops = 2 * Bp * (IN_F * H1_PAD + H1_PAD * H2_PAD + H2_PAD * OUT_PAD)
    bytes_accessed = (x.size * 4
                      + (w1.size + w2.size + w3.size) * 2
                      + (b1.size + b2.size + b3.size) * 4
                      + Bp * OUT_PAD * 4)

    out = pl.pallas_call(
        mlp_mnist_kernel,
        out_shape=jax.ShapeDtypeStruct((Bp, OUT_PAD), jnp.float32),
        grid_spec=pltpu.PrefetchScalarGridSpec(
            num_scalar_prefetch=0,
            grid=(Bp // tb,),
            in_specs=[
                pl.BlockSpec((tb, IN_F), lambda i: (i, 0)),         # x tile
                pl.BlockSpec((IN_F, H1_PAD), lambda i: (0, 0)),     # W1 (resident)
                pl.BlockSpec((1, H1_PAD), lambda i: (0, 0)),        # b1
                pl.BlockSpec((H1_PAD, H2_PAD), lambda i: (0, 0)),   # W2 (resident)
                pl.BlockSpec((1, H2_PAD), lambda i: (0, 0)),        # b2
                pl.BlockSpec((H2_PAD, OUT_PAD), lambda i: (0, 0)),  # W3 (resident)
                pl.BlockSpec((1, OUT_PAD), lambda i: (0, 0)),       # b3
            ],
            out_specs=pl.BlockSpec((tb, OUT_PAD), lambda i: (i, 0)),
        ),
        compiler_params=pltpu.CompilerParams(
            dimension_semantics=("parallel",)),
        cost_estimate=pl.CostEstimate(
            flops=flops, transcendentals=0, bytes_accessed=bytes_accessed),
    )(x, w1, b1, w2, b2, w3, b3)

    return out[:B, :num_classes]


# --------------------------------------------------------------------------
# Synthetic params (PyTorch-shaped) and references.
# --------------------------------------------------------------------------
def init_params(key, num_classes=10):
    """Deterministic synthetic parameters matching LinearGroupNJ shapes:
    z_mu (1, in), weight_mu (out, in), bias_mu (out,)."""
    dims = [(IN_F, H1), (H1, H2), (H2, num_classes)]
    params = []
    for i, (din, dout) in enumerate(dims):
        k_w, k_b, k_z = jax.random.split(jax.random.fold_in(key, i), 3)
        w = (jax.random.normal(k_w, (dout, din), jnp.float32)
             / jnp.sqrt(jnp.float32(din)))
        b = 0.01 * jax.random.normal(k_b, (dout,), jnp.float32)
        z = 1.0 + 0.1 * jax.random.normal(k_z, (1, din), jnp.float32)
        params.append((z, w, b))
    return params


def reference_forward(x_nchw, params):
    """Full-precision reference with the original (unfolded) parameters."""
    x = x_nchw.reshape(x_nchw.shape[0], IN_F)
    (z1, w1, b1), (z2, w2, b2), (z3, w3, b3) = params
    h1 = jnp.maximum((x * z1) @ w1.T + b1, 0.0)
    h2 = jnp.maximum((h1 * z2) @ w2.T + b2, 0.0)
    return (h2 * z3) @ w3.T + b3


def reference_forward_bf16(x_nchw, kernel_params, num_classes=10):
    """Reference that mimics the kernel's bf16/padded arithmetic exactly."""
    x = x_nchw.reshape(x_nchw.shape[0], IN_F).astype(jnp.bfloat16)
    (w1, b1), (w2, b2), (w3, b3) = kernel_params
    h1 = jnp.maximum(jnp.dot(x, w1, preferred_element_type=jnp.float32) + b1, 0.0)
    h1 = h1.astype(jnp.bfloat16)
    h2 = jnp.maximum(jnp.dot(h1, w2, preferred_element_type=jnp.float32) + b2, 0.0)
    h2 = h2.astype(jnp.bfloat16)
    out = jnp.dot(h2, w3, preferred_element_type=jnp.float32) + b3
    return out[:, :num_classes]


if __name__ == "__main__":
    key = jax.random.PRNGKey(0)
    k_x, k_p = jax.random.split(key)

    B = 8
    x = jax.random.normal(k_x, (B, 1, 28, 28), jnp.float32)   # NCHW like torch
    params = init_params(k_p, num_classes=10)
    kparams = convert_params_for_kernel(params)

    out = mlp_mnist_forward(x, kparams, num_classes=10)
    out = jax.block_until_ready(out)
    assert out.shape == (B, 10)

    # Strict check vs a reference that matches the kernel's bf16/padded math.
    ref_bf16 = reference_forward_bf16(x, kparams, num_classes=10)
    assert jnp.allclose(out, ref_bf16, atol=1e-2, rtol=1e-2)

    # Loose check vs the full-precision original semantics.
    ref_f32 = reference_forward(x, params)
    assert jnp.allclose(out, ref_f32, atol=5e-2, rtol=5e-2)

    print("KERNEL_OK")
</pallas_src>

<mosaic_0001>
module attributes {stable_mosaic.version = 11 : i64} {
  func.func @mlp_mnist_kernel(%arg0: i32, %arg1: memref<8x784xf32, #tpu.memory_space<vmem>>, %arg2: memref<784x384xbf16, #tpu.memory_space<vmem>>, %arg3: memref<1x384xf32, #tpu.memory_space<vmem>>, %arg4: memref<384x128xbf16, #tpu.memory_space<vmem>>, %arg5: memref<1x128xf32, #tpu.memory_space<vmem>>, %arg6: memref<128x128xbf16, #tpu.memory_space<vmem>>, %arg7: memref<1x128xf32, #tpu.memory_space<vmem>>, %arg8: memref<8x128xf32, #tpu.memory_space<vmem>>) attributes {dimension_semantics = [#tpu.dimension_semantics<parallel>], iteration_bounds = array<i64: 1>, scalar_prefetch = 0 : i64, scratch_operands = 0 : i64, tpu.core_type = #tpu.core_type<tc>, window_params = [{transform_indices = @transform_0, window_bounds = array<i64: 8, 784>}, {pipeline_mode = #tpu.pipeline_mode<synchronous>, transform_indices = @transform_1, window_bounds = array<i64: 784, 384>}, {pipeline_mode = #tpu.pipeline_mode<synchronous>, transform_indices = @transform_2, window_bounds = array<i64: 1, 384>}, {pipeline_mode = #tpu.pipeline_mode<synchronous>, transform_indices = @transform_3, window_bounds = array<i64: 384, 128>}, {pipeline_mode = #tpu.pipeline_mode<synchronous>, transform_indices = @transform_4, window_bounds = array<i64: 1, 128>}, {pipeline_mode = #tpu.pipeline_mode<synchronous>, transform_indices = @transform_5, window_bounds = array<i64: 128, 128>}, {pipeline_mode = #tpu.pipeline_mode<synchronous>, transform_indices = @transform_6, window_bounds = array<i64: 1, 128>}, {transform_indices = @transform_7, window_bounds = array<i64: 8, 128>}]} {
    %c0 = arith.constant 0 : index
    %c0_0 = arith.constant 0 : index
    %0 = vector.load %arg1[%c0, %c0_0] : memref<8x784xf32, #tpu.memory_space<vmem>>, vector<8x784xf32>
    %1 = arith.truncf %0 : vector<8x784xf32> to vector<8x784xbf16>
    %c0_1 = arith.constant 0 : index
    %c0_2 = arith.constant 0 : index
    %2 = vector.load %arg2[%c0_1, %c0_2] : memref<784x384xbf16, #tpu.memory_space<vmem>>, vector<784x384xbf16>
    %cst = arith.constant dense<0.000000e+00> : vector<8x384xf32>
    %3 = tpu.matmul %1, %2, %cst {dimension_numbers = #tpu.dot_dimension_numbers<[1], [0], [0], [1], [0, 0, 1, 1], [], []>} : vector<8x784xbf16>, vector<784x384xbf16>, vector<8x384xf32> -> vector<8x384xf32>
    %c0_3 = arith.constant 0 : index
    %c0_4 = arith.constant 0 : index
    %4 = vector.load %arg3[%c0_3, %c0_4] : memref<1x384xf32, #tpu.memory_space<vmem>>, vector<1x384xf32>
    %5 = vector.broadcast %4 : vector<1x384xf32> to vector<8x384xf32>
    %6 = arith.addf %3, %5 : vector<8x384xf32>
    %cst_5 = arith.constant 0.000000e+00 : f32
    %7 = vector.broadcast %cst_5 : f32 to vector<8x384xf32>
    %8 = arith.maximumf %6, %7 : vector<8x384xf32>
    %9 = arith.truncf %8 : vector<8x384xf32> to vector<8x384xbf16>
    %c0_6 = arith.constant 0 : index
    %c0_7 = arith.constant 0 : index
    %10 = vector.load %arg4[%c0_6, %c0_7] : memref<384x128xbf16, #tpu.memory_space<vmem>>, vector<384x128xbf16>
    %cst_8 = arith.constant dense<0.000000e+00> : vector<8x128xf32>
    %11 = tpu.matmul %9, %10, %cst_8 {dimension_numbers = #tpu.dot_dimension_numbers<[1], [0], [0], [1], [0, 0, 1, 1], [], []>} : vector<8x384xbf16>, vector<384x128xbf16>, vector<8x128xf32> -> vector<8x128xf32>
    %c0_9 = arith.constant 0 : index
    %c0_10 = arith.constant 0 : index
    %12 = vector.load %arg5[%c0_9, %c0_10] : memref<1x128xf32, #tpu.memory_space<vmem>>, vector<1x128xf32>
    %13 = vector.broadcast %12 : vector<1x128xf32> to vector<8x128xf32>
    %14 = arith.addf %11, %13 : vector<8x128xf32>
    %cst_11 = arith.constant 0.000000e+00 : f32
    %15 = vector.broadcast %cst_11 : f32 to vector<8x128xf32>
    %16 = arith.maximumf %14, %15 : vector<8x128xf32>
    %17 = arith.truncf %16 : vector<8x128xf32> to vector<8x128xbf16>
    %c0_12 = arith.constant 0 : index
    %c0_13 = arith.constant 0 : index
    %18 = vector.load %arg6[%c0_12, %c0_13] : memref<128x128xbf16, #tpu.memory_space<vmem>>, vector<128x128xbf16>
    %cst_14 = arith.constant dense<0.000000e+00> : vector<8x128xf32>
    %19 = tpu.matmul %17, %18, %cst_14 {dimension_numbers = #tpu.dot_dimension_numbers<[1], [0], [0], [1], [0, 0, 1, 1], [], []>} : vector<8x128xbf16>, vector<128x128xbf16>, vector<8x128xf32> -> vector<8x128xf32>
    %c0_15 = arith.constant 0 : index
    %c0_16 = arith.constant 0 : index
    %20 = vector.load %arg7[%c0_15, %c0_16] : memref<1x128xf32, #tpu.memory_space<vmem>>, vector<1x128xf32>
    %21 = vector.broadcast %20 : vector<1x128xf32> to vector<8x128xf32>
    %22 = arith.addf %19, %21 : vector<8x128xf32>
    %c0_17 = arith.constant 0 : index
    %c0_18 = arith.constant 0 : index
    %23 = vector.load %arg8[%c0_17, %c0_18] : memref<8x128xf32, #tpu.memory_space<vmem>>, vector<8x128xf32>
    tpu.vector_store %arg8[%c0_17, %c0_18], %22 {strides = array<i32>} : memref<8x128xf32, #tpu.memory_space<vmem>>, vector<8x128xf32>,
    return
  }
  func.func @transform_0(%arg0: i32) -> (i32, i32) {
    %c0_i32 = arith.constant 0 : i32
    %c0_i32_0 = arith.constant 0 : i32
    return %arg0, %c0_i32 : i32, i32
  }
  func.func @transform_1(%arg0: i32) -> (i32, i32) {
    %c0_i32 = arith.constant 0 : i32
    %c0_i32_0 = arith.constant 0 : i32
    %c0_i32_1 = arith.constant 0 : i32
    return %c0_i32, %c0_i32_0 : i32, i32
  }
  func.func @transform_2(%arg0: i32) -> (i32, i32) {
    %c0_i32 = arith.constant 0 : i32
    %c0_i32_0 = arith.constant 0 : i32
    %c0_i32_1 = arith.constant 0 : i32
    return %c0_i32, %c0_i32_0 : i32, i32
  }
  func.func @transform_3(%arg0: i32) -> (i32, i32) {
    %c0_i32 = arith.constant 0 : i32
    %c0_i32_0 = arith.constant 0 : i32
    %c0_i32_1 = arith.constant 0 : i32
    return %c0_i32, %c0_i32_0 : i32, i32
  }
  func.func @transform_4(%arg0: i32) -> (i32, i32) {
    %c0_i32 = arith.constant 0 : i32
    %c0_i32_0 = arith.constant 0 : i32
    %c0_i32_1 = arith.constant 0 : i32
    return %c0_i32, %c0_i32_0 : i32, i32
  }
  func.func @transform_5(%arg0: i32) -> (i32, i32) {
    %c0_i32 = arith.constant 0 : i32
    %c0_i32_0 = arith.constant 0 : i32
    %c0_i32_1 = arith.constant 0 : i32
    return %c0_i32, %c0_i32_0 : i32, i32
  }
  func.func @transform_6(%arg0: i32) -> (i32, i32) {
    %c0_i32 = arith.constant 0 : i32
    %c0_i32_0 = arith.constant 0 : i32
    %c0_i32_1 = arith.constant 0 : i32
    return %c0_i32, %c0_i32_0 : i32, i32
  }
  func.func @transform_7(%arg0: i32) -> (i32, i32) {
    %c0_i32 = arith.constant 0 : i32
    %c0_i32_0 = arith.constant 0 : i32
    return %arg0, %c0_i32 : i32, i32
  }
}

</mosaic_0001>

<llo_original>
// kernel: mlp_mnist_forward.1
$region0: #{mlp_mnist_forward.1}
  #allocation0 [shape = 'u32[]', space=smem, size = 0x4, offset = 0x4, fixed_abs, tag = 'smem constant byte address 0x4 - core index']
  #allocation1 [shape = 'u32[72,128]{1,0:T(1,128)}', space=vmem, size = 0x9000, scoped, tag = 'internal scratch']
  %s0 = inlined_call_operand.vmem [shape: f32[8,784], index: 0, kind: input, shape index: {}]
  %s1 = inlined_call_operand.hbm [shape: bf16[784,384], index: 1, kind: input, shape index: {}]
  %s2 = inlined_call_operand.vmem [shape: f32[1,384], index: 2, kind: input, shape index: {}]
  %s3 = inlined_call_operand.vmem [shape: bf16[384,128], index: 3, kind: input, shape index: {}]
  %s4 = inlined_call_operand.vmem [shape: f32[1,128], index: 4, kind: input, shape index: {}]
  %s5 = inlined_call_operand.vmem [shape: bf16[128,128], index: 5, kind: input, shape index: {}]
  %s6 = inlined_call_operand.vmem [shape: f32[1,128], index: 6, kind: input, shape index: {}]
  %s7 = inlined_call_operand.hbm [shape: f32[8,128], index: 7, kind: output, shape index: {}]
  %s8 = sld [smem:[#allocation0]]
  $region42: #{mlp_mnist_forward.1} parent=0
    _
  %s10 = ssub.s32 1, %s8
  %s11 = scalar_select 0, %s10, %s8
  $region1: #{mlp_mnist_forward.1} parent=0
    #allocation2 [shape = 'u8[602112]{0}', space=vmem, size = 0x93000, scoped, tag = 'input window, operand 1, single buffered']
    #allocation3 [shape = 's32[1]{0}', space=sflag, size = 0x4, scoped, tag = 'scoped memory for mlp_mnist_forward.1']
    #allocation4 [shape = 's32[1]{0}', space=sflag, size = 0x4, scoped, tag = 'scoped memory for mlp_mnist_forward.1']
    #allocation5 [shape = 'u8[4096]{0}', space=vmem, size = 0x1000, scoped, tag = 'output window, operand 0, single buffered']
    %12 = vsyncpa [#allocation3], 0
    %13 = vsyncpa [#allocation4], 0
    // Predicated region
    $region2: #{mlp_mnist_forward.1} parent=1 // pred_check
      _
    $region3: #{mlp_mnist_forward.1} parent=1 // pred_check_branch
      %15 = sbr.rel (0) target = $region5
    $region4: #{mlp_mnist_forward.1} parent=1 // pred_region
      _
    $region5: #{mlp_mnist_forward.1} parent=1 // pred_fallthru
      _
    // Predicated region
    $region6: #{mlp_mnist_forward.1} parent=1 // pred_check
      _
    $region7: #{mlp_mnist_forward.1} parent=1 // pred_check_branch
      %17 = sbr.rel (0) target = $region9
    $region8: #{mlp_mnist_forward.1} parent=1 // pred_region
      %19 = vsyncadd [#allocation3], 0
      %s20 = sshll.u32 %s1, 4
      %s21 = int_to_ptr.hbm [resolvable:$true] %s20
      %s22 = sshll.u32 [#allocation2], 4
      %s23 = int_to_ptr.vmem [resolvable:$true] %s22
      %28 = dma.hbm_to_vmem [thread:$0]  %s21, 18816, %s23, [#allocation3], 192, 192, 12
    $region9: #{mlp_mnist_forward.1} parent=1 // pred_fallthru
      _
    // Predicated region
    $region10: #{mlp_mnist_forward.1} parent=1 // pred_check
      _
    $region11: #{mlp_mnist_forward.1} parent=1 // pred_check_branch
      %30 = sbr.rel (0) target = $region13
    $region12: #{mlp_mnist_forward.1} parent=1 // pred_region
      _
    $region13: #{mlp_mnist_forward.1} parent=1 // pred_fallthru
      _
    // Predicated region
    $region14: #{mlp_mnist_forward.1} parent=1 // pred_check
      _
    $region15: #{mlp_mnist_forward.1} parent=1 // pred_check_branch
      %32 = sbr.rel (0) target = $region17
    $region16: #{mlp_mnist_forward.1} parent=1 // pred_region
      _
    $region17: #{mlp_mnist_forward.1} parent=1 // pred_fallthru
      _
    // Predicated region
    $region18: #{mlp_mnist_forward.1} parent=1 // pred_check
      _
    $region19: #{mlp_mnist_forward.1} parent=1 // pred_check_branch
      %34 = sbr.rel (0) target = $region21
    $region20: #{mlp_mnist_forward.1} parent=1 // pred_region
      _
    $region21: #{mlp_mnist_forward.1} parent=1 // pred_fallthru
      _
    // Predicated region
    $region22: #{mlp_mnist_forward.1} parent=1 // pred_check
      _
    $region23: #{mlp_mnist_forward.1} parent=1 // pred_check_branch
      %36 = sbr.rel (0) target = $region25
    $region24: #{mlp_mnist_forward.1} parent=1 // pred_region
      _
    $region25: #{mlp_mnist_forward.1} parent=1 // pred_fallthru
      _
    // Predicated region
    $region26: #{mlp_mnist_forward.1} parent=1 // pred_check
      _
    $region27: #{mlp_mnist_forward.1} parent=1 // pred_check_branch
      %38 = sbr.rel (0) target = $region29
    $region28: #{mlp_mnist_forward.1} parent=1 // pred_region
      _
    $region29: #{mlp_mnist_forward.1} parent=1 // pred_fallthru
      _
    // Predicated region
    $region30: #{mlp_mnist_forward.1} parent=1 // pred_check
      _
    $region31: #{mlp_mnist_forward.1} parent=1 // pred_check_branch
      %40 = sbr.rel (0) target = $region33
    $region32: #{mlp_mnist_forward.1} parent=1 // pred_region
      %42 = dma.done [#allocation3], 18816
    $region33: #{mlp_mnist_forward.1} parent=1 // pred_fallthru
      _
    %v44 = vld [vmem:[%s0] sm:$0xff]
    %v45 = vld [vmem:[%s0 + $0x8] sm:$0xff]
    %v46 = vld [vmem:[%s0 + $0x10] sm:$0xff]
    %v47 = vld [vmem:[%s0 + $0x18] sm:$0xff]
    %v48 = vld [vmem:[%s0 + $0x20] sm:$0xff]
    %v49 = vld [vmem:[%s0 + $0x28] sm:$0xff]
    %v50 = vld [vmem:[%s0 + $0x30] sm:$0xff]
    %v51 = vpack.c.bf16 %v44, %v44
    %v52 = vpack.c.bf16 %v45, %v45
    %v53 = vpack.c.bf16 %v46, %v46
    %v54 = vpack.c.bf16 %v47, %v47
    %v55 = vpack.c.bf16 %v48, %v48
    %v56 = vpack.c.bf16 %v49, %v49
    %v57 = vpack.c.bf16 %v50, %v50
    %v58 = vld [vmem:[#allocation2] sm:$0xff]
    %v59 = vld [vmem:[#allocation2 + $0x8] sm:$0xf]
    %v60 = vld [vmem:[#allocation2 + $0xc] sm:$0xff]
    %v61 = vld [vmem:[#allocation2 + $0x14] sm:$0xf]
    %v62 = vld [vmem:[#allocation2 + $0x18] sm:$0xff]
    %v63 = vld [vmem:[#allocation2 + $0x20] sm:$0xf]
    %v64 = vld [vmem:[#allocation2 + $0x24] sm:$0xff]
    %v65 = vld [vmem:[#allocation2 + $0x2c] sm:$0xf]
    %v66 = vld [vmem:[#allocation2 + $0x30] sm:$0xff]
    %v67 = vld [vmem:[#allocation2 + $0x38] sm:$0xf]
    %v68 = vld [vmem:[#allocation2 + $0x3c] sm:$0xff]
    %v69 = vld [vmem:[#allocation2 + $0x44] sm:$0xf]
    %v70 = vld [vmem:[#allocation2 + $0x48] sm:$0xff]
    %v71 = vld [vmem:[#allocation2 + $0x50] sm:$0xf]
    %v72 = vld [vmem:[#allocation2 + $0x54] sm:$0xff]
    %v73 = vld [vmem:[#allocation2 + $0x5c] sm:$0xf]
    %v74 = vld [vmem:[#allocation2 + $0x60] sm:$0xff]
    %v75 = vld [vmem:[#allocation2 + $0x68] sm:$0xf]
    %v76 = vld [vmem:[#allocation2 + $0x6c] sm:$0xff]
    %v77 = vld [vmem:[#allocation2 + $0x74] sm:$0xf]
    %v78 = vld [vmem:[#allocation2 + $0x78] sm:$0xff]
    %v79 = vld [vmem:[#allocation2 + $0x80] sm:$0xf]
    %v80 = vld [vmem:[#allocation2 + $0x84] sm:$0xff]
    %v81 = vld [vmem:[#allocation2 + $0x8c] sm:$0xf]
    %v82 = vld [vmem:[#allocation2 + $0x90] sm:$0xff]
    %v83 = vld [vmem:[#allocation2 + $0x98] sm:$0xf]
    %v84 = vld [vmem:[#allocation2 + $0x9c] sm:$0xff]
    %v85 = vld [vmem:[#allocation2 + $0xa4] sm:$0xf]
    %v86 = vld [vmem:[#allocation2 + $0xa8] sm:$0xff]
    %v87 = vld [vmem:[#allocation2 + $0xb0] sm:$0xf]
    %v88 = vld [vmem:[#allocation2 + $0xb4] sm:$0xff]
    %v89 = vld [vmem:[#allocation2 + $0xbc] sm:$0xf]
    %v90 = vld [vmem:[#allocation2 + $0xc0] sm:$0xff]
    %v91 = vld [vmem:[#allocation2 + $0xc8] sm:$0xf]
    %v92 = vld [vmem:[#allocation2 + $0xcc] sm:$0xff]
    %v93 = vld [vmem:[#allocation2 + $0xd4] sm:$0xf]
    %v94 = vld [vmem:[#allocation2 + $0xd8] sm:$0xff]
    %v95 = vld [vmem:[#allocation2 + $0xe0] sm:$0xf]
    %v96 = vld [vmem:[#allocation2 + $0xe4] sm:$0xff]
    %v97 = vld [vmem:[#allocation2 + $0xec] sm:$0xf]
    %v98 = vld [vmem:[#allocation2 + $0xf0] sm:$0xff]
    %v99 = vld [vmem:[#allocation2 + $0xf8] sm:$0xf]
    %v100 = vld [vmem:[#allocation2 + $0xfc] sm:$0xff]
    %v101 = vld [vmem:[#allocation2 + $0x104] sm:$0xf]
    %v102 = vld [vmem:[#allocation2 + $0x108] sm:$0xff]
    %v103 = vld [vmem:[#allocation2 + $0x110] sm:$0xf]
    %v104 = vld [vmem:[#allocation2 + $0x114] sm:$0xff]
    %v105 = vld [vmem:[#allocation2 + $0x11c] sm:$0xf]
    %v106 = vld [vmem:[#allocation2 + $0x120] sm:$0xff]
    %v107 = vld [vmem:[#allocation2 + $0x128] sm:$0xf]
    %v108 = vld [vmem:[#allocation2 + $0x12c] sm:$0xff]
    %v109 = vld [vmem:[#allocation2 + $0x134] sm:$0xf]
    %v110 = vld [vmem:[#allocation2 + $0x138] sm:$0xff]
    %v111 = vld [vmem:[#allocation2 + $0x140] sm:$0xf]
    %v112 = vld [vmem:[#allocation2 + $0x144] sm:$0xff]
    %v113 = vld [vmem:[#allocation2 + $0x14c] sm:$0xf]
    %v114 = vld [vmem:[#allocation2 + $0x150] sm:$0xff]
    %v115 = vld [vmem:[#allocation2 + $0x158] sm:$0xf]
    %v116 = vld [vmem:[#allocation2 + $0x15c] sm:$0xff]
    %v117 = vld [vmem:[#allocation2 + $0x164] sm:$0xf]
    %v118 = vld [vmem:[#allocation2 + $0x168] sm:$0xff]
    %v119 = vld [vmem:[#allocation2 + $0x170] sm:$0xf]
    %v120 = vld [vmem:[#allocation2 + $0x174] sm:$0xff]
    %v121 = vld [vmem:[#allocation2 + $0x17c] sm:$0xf]
    %v122 = vld [vmem:[#allocation2 + $0x180] sm:$0xff]
    %v123 = vld [vmem:[#allocation2 + $0x188] sm:$0xf]
    %v124 = vld [vmem:[#allocation2 + $0x18c] sm:$0xff]
    %v125 = vld [vmem:[#allocation2 + $0x194] sm:$0xf]
    %v126 = vld [vmem:[#allocation2 + $0x198] sm:$0xff]
    %v127 = vld [vmem:[#allocation2 + $0x1a0] sm:$0xf]
    %v128 = vld [vmem:[#allocation2 + $0x1a4] sm:$0xff]
    %v129 = vld [vmem:[#allocation2 + $0x1ac] sm:$0xf]
    %v130 = vld [vmem:[#allocation2 + $0x1b0] sm:$0xff]
    %v131 = vld [vmem:[#allocation2 + $0x1b8] sm:$0xf]
    %v132 = vld [vmem:[#allocation2 + $0x1bc] sm:$0xff]
    %v133 = vld [vmem:[#allocation2 + $0x1c4] sm:$0xf]
    %v134 = vld [vmem:[#allocation2 + $0x1c8] sm:$0xff]
    %v135 = vld [vmem:[#allocation2 + $0x1d0] sm:$0xf]
    %v136 = vld [vmem:[#allocation2 + $0x1d4] sm:$0xff]
    %v137 = vld [vmem:[#allocation2 + $0x1dc] sm:$0xf]
    %v138 = vld [vmem:[#allocation2 + $0x1e0] sm:$0xff]
    %v139 = vld [vmem:[#allocation2 + $0x1e8] sm:$0xf]
    %v140 = vld [vmem:[#allocation2 + $0x1ec] sm:$0xff]
    %v141 = vld [vmem:[#allocation2 + $0x1f4] sm:$0xf]
    %v142 = vld [vmem:[#allocation2 + $0x1f8] sm:$0xff]
    %v143 = vld [vmem:[#allocation2 + $0x200] sm:$0xf]
    %v144 = vld [vmem:[#allocation2 + $0x204] sm:$0xff]
    %v145 = vld [vmem:[#allocation2 + $0x20c] sm:$0xf]
    %v146 = vld [vmem:[#allocation2 + $0x210] sm:$0xff]
    %v147 = vld [vmem:[#allocation2 + $0x218] sm:$0xf]
    %v148 = vld [vmem:[#allocation2 + $0x21c] sm:$0xff]
    %v149 = vld [vmem:[#allocation2 + $0x224] sm:$0xf]
    %v150 = vld [vmem:[#allocation2 + $0x228] sm:$0xff]
    %v151 = vld [vmem:[#allocation2 + $0x230] sm:$0xf]
    %v152 = vld [vmem:[#allocation2 + $0x234] sm:$0xff]
    %v153 = vld [vmem:[#allocation2 + $0x23c] sm:$0xf]
    %v154 = vld [vmem:[#allocation2 + $0x240] sm:$0xff]
    %v155 = vld [vmem:[#allocation2 + $0x248] sm:$0xf]
    %v156 = vld [vmem:[#allocation2 + $0x24c] sm:$0xff]
    %v157 = vld [vmem:[#allocation2 + $0x254] sm:$0xf]
    %v158 = vld [vmem:[#allocation2 + $0x258] sm:$0xff]
    %v159 = vld [vmem:[#allocation2 + $0x260] sm:$0xf]
    %v160 = vld [vmem:[#allocation2 + $0x264] sm:$0xff]
    %v161 = vld [vmem:[#allocation2 + $0x26c] sm:$0xf]
    %v162 = vld [vmem:[#allocation2 + $0x270] sm:$0xff]
    %v163 = vld [vmem:[#allocation2 + $0x278] sm:$0xf]
    %v164 = vld [vmem:[#allocation2 + $0x27c] sm:$0xff]
    %v165 = vld [vmem:[#allocation2 + $0x284] sm:$0xf]
    %v166 = vld [vmem:[#allocation2 + $0x288] sm:$0xff]
    %v167 = vld [vmem:[#allocation2 + $0x290] sm:$0xf]
    %v168 = vld [vmem:[#allocation2 + $0x294] sm:$0xff]
    %v169 = vld [vmem:[#allocation2 + $0x29c] sm:$0xf]
    %v170 = vld [vmem:[#allocation2 + $0x2a0] sm:$0xff]
    %v171 = vld [vmem:[#allocation2 + $0x2a8] sm:$0xf]
    %v172 = vld [vmem:[#allocation2 + $0x2ac] sm:$0xff]
    %v173 = vld [vmem:[#allocation2 + $0x2b4] sm:$0xf]
    %v174 = vld [vmem:[#allocation2 + $0x2b8] sm:$0xff]
    %v175 = vld [vmem:[#allocation2 + $0x2c0] sm:$0xf]
    %v176 = vld [vmem:[#allocation2 + $0x2c4] sm:$0xff]
    %v177 = vld [vmem:[#allocation2 + $0x2cc] sm:$0xf]
    %v178 = vld [vmem:[#allocation2 + $0x2d0] sm:$0xff]
    %v179 = vld [vmem:[#allocation2 + $0x2d8] sm:$0xf]
    %v180 = vld [vmem:[#allocation2 + $0x2dc] sm:$0xff]
    %v181 = vld [vmem:[#allocation2 + $0x2e4] sm:$0xf]
    %v182 = vld [vmem:[#allocation2 + $0x2e8] sm:$0xff]
    %v183 = vld [vmem:[#allocation2 + $0x2f0] sm:$0xf]
    %v184 = vld [vmem:[#allocation2 + $0x2f4] sm:$0xff]
    %v185 = vld [vmem:[#allocation2 + $0x2fc] sm:$0xf]
    %v186 = vld [vmem:[#allocation2 + $0x300] sm:$0xff]
    %v187 = vld [vmem:[#allocation2 + $0x308] sm:$0xf]
    %v188 = vld [vmem:[#allocation2 + $0x30c] sm:$0xff]
    %v189 = vld [vmem:[#allocation2 + $0x314] sm:$0xf]
    %v190 = vld [vmem:[#allocation2 + $0x318] sm:$0xff]
    %v191 = vld [vmem:[#allocation2 + $0x320] sm:$0xf]
    %v192 = vld [vmem:[#allocation2 + $0x324] sm:$0xff]
    %v193 = vld [vmem:[#allocation2 + $0x32c] sm:$0xf]
    %v194 = vld [vmem:[#allocation2 + $0x330] sm:$0xff]
    %v195 = vld [vmem:[#allocation2 + $0x338] sm:$0xf]
    %v196 = vld [vmem:[#allocation2 + $0x33c] sm:$0xff]
    %v197 = vld [vmem:[#allocation2 + $0x344] sm:$0xf]
    %v198 = vld [vmem:[#allocation2 + $0x348] sm:$0xff]
    %v199 = vld [vmem:[#allocation2 + $0x350] sm:$0xf]
    %v200 = vld [vmem:[#allocation2 + $0x354] sm:$0xff]
    %v201 = vld [vmem:[#allocation2 + $0x35c] sm:$0xf]
    %v202 = vld [vmem:[#allocation2 + $0x360] sm:$0xff]
    %v203 = vld [vmem:[#allocation2 + $0x368] sm:$0xf]
    %v204 = vld [vmem:[#allocation2 + $0x36c] sm:$0xff]
    %v205 = vld [vmem:[#allocation2 + $0x374] sm:$0xf]
    %v206 = vld [vmem:[#allocation2 + $0x378] sm:$0xff]
    %v207 = vld [vmem:[#allocation2 + $0x380] sm:$0xf]
    %v208 = vld [vmem:[#allocation2 + $0x384] sm:$0xff]
    %v209 = vld [vmem:[#allocation2 + $0x38c] sm:$0xf]
    %v210 = vld [vmem:[#allocation2 + $0x390] sm:$0xff]
    %v211 = vld [vmem:[#allocation2 + $0x398] sm:$0xf]
    %v212 = vld [vmem:[#allocation2 + $0x39c] sm:$0xff]
    %v213 = vld [vmem:[#allocation2 + $0x3a4] sm:$0xf]
    %v214 = vld [vmem:[#allocation2 + $0x3a8] sm:$0xff]
    %v215 = vld [vmem:[#allocation2 + $0x3b0] sm:$0xf]
    %v216 = vld [vmem:[#allocation2 + $0x3b4] sm:$0xff]
    %v217 = vld [vmem:[#allocation2 + $0x3bc] sm:$0xf]
    %v218 = vld [vmem:[#allocation2 + $0x3c0] sm:$0xff]
    %v219 = vld [vmem:[#allocation2 + $0x3c8] sm:$0xf]
    %v220 = vld [vmem:[#allocation2 + $0x3cc] sm:$0xff]
    %v221 = vld [vmem:[#allocation2 + $0x3d4] sm:$0xf]
    %v222 = vld [vmem:[#allocation2 + $0x3d8] sm:$0xff]
    %v223 = vld [vmem:[#allocation2 + $0x3e0] sm:$0xf]
    %v224 = vld [vmem:[#allocation2 + $0x3e4] sm:$0xff]
    %v225 = vld [vmem:[#allocation2 + $0x3ec] sm:$0xf]
    %v226 = vld [vmem:[#allocation2 + $0x3f0] sm:$0xff]
    %v227 = vld [vmem:[#allocation2 + $0x3f8] sm:$0xf]
    %v228 = vld [vmem:[#allocation2 + $0x3fc] sm:$0xff]
    %v229 = vld [vmem:[#allocation2 + $0x404] sm:$0xf]
    %v230 = vld [vmem:[#allocation2 + $0x408] sm:$0xff]
    %v231 = vld [vmem:[#allocation2 + $0x410] sm:$0xf]
    %v232 = vld [vmem:[#allocation2 + $0x414] sm:$0xff]
    %v233 = vld [vmem:[#allocation2 + $0x41c] sm:$0xf]
    %v234 = vld [vmem:[#allocation2 + $0x420] sm:$0xff]
    %v235 = vld [vmem:[#allocation2 + $0x428] sm:$0xf]
    %v236 = vld [vmem:[#allocation2 + $0x42c] sm:$0xff]
    %v237 = vld [vmem:[#allocation2 + $0x434] sm:$0xf]
    %v238 = vld [vmem:[#allocation2 + $0x438] sm:$0xff]
    %v239 = vld [vmem:[#allocation2 + $0x440] sm:$0xf]
    %v240 = vld [vmem:[#allocation2 + $0x444] sm:$0xff]
    %v241 = vld [vmem:[#allocation2 + $0x44c] sm:$0xf]
    %v242 = vld [vmem:[#allocation2 + $0x450] sm:$0xff]
    %v243 = vld [vmem:[#allocation2 + $0x458] sm:$0xf]
    %v244 = vld [vmem:[#allocation2 + $0x45c] sm:$0xff]
    %v245 = vld [vmem:[#allocation2 + $0x464] sm:$0xf]
    %v246 = vld [vmem:[#allocation2 + $0x468] sm:$0xff]
    %v247 = vld [vmem:[#allocation2 + $0x470] sm:$0xf]
    %v248 = vld [vmem:[#allocation2 + $0x474] sm:$0xff]
    %v249 = vld [vmem:[#allocation2 + $0x47c] sm:$0xf]
    %v250 = vld [vmem:[#allocation2 + $0x480] sm:$0xff]
    %v251 = vld [vmem:[#allocation2 + $0x488] sm:$0xf]
    %v252 = vld [vmem:[#allocation2 + $0x48c] sm:$0xff]
    %v253 = vld [vmem:[#allocation2 + $0x494] sm:$0xf]
    %v254 = vld [vmem:[%s2] sm:$0x7]
    %v256 = vperm.slane %v254, 0
    %v257 = vperm.slane %v254, 1
    %v258 = vperm.slane %v254, 2
    %v458 = vunpack.c.l.b16 %v58
    %v459 = vunpack.c.h.b16 %v58
    %v460 = vunpack.c.l.b16 %v59
    %v461 = vunpack.c.l.b16 %v60
    %v462 = vunpack.c.h.b16 %v60
    %v463 = vunpack.c.l.b16 %v61
    %v464 = vunpack.c.l.b16 %v62
    %v465 = vunpack.c.h.b16 %v62
    %v466 = vunpack.c.l.b16 %v63
    %v467 = vunpack.c.l.b16 %v64
    %v468 = vunpack.c.h.b16 %v64
    %v469 = vunpack.c.l.b16 %v65
    %v470 = vunpack.c.l.b16 %v66
    %v471 = vunpack.c.h.b16 %v66
    %v472 = vunpack.c.l.b16 %v67
    %v473 = vunpack.c.l.b16 %v68
    %v474 = vunpack.c.h.b16 %v68
    %v475 = vunpack.c.l.b16 %v69
    %v476 = vunpack.c.l.b16 %v70
    %v477 = vunpack.c.h.b16 %v70
    %v478 = vunpack.c.l.b16 %v71
    %v479 = vunpack.c.l.b16 %v72
    %v480 = vunpack.c.h.b16 %v72
    %v481 = vunpack.c.l.b16 %v73
    %v482 = vunpack.c.l.b16 %v74
    %v483 = vunpack.c.h.b16 %v74
    %v484 = vunpack.c.l.b16 %v75
    %v485 = vunpack.c.l.b16 %v76
    %v486 = vunpack.c.h.b16 %v76
    %v487 = vunpack.c.l.b16 %v77
    %v488 = vunpack.c.l.b16 %v78
    %v489 = vunpack.c.h.b16 %v78
    %v490 = vunpack.c.l.b16 %v79
    %v491 = vunpack.c.l.b16 %v80
    %v492 = vunpack.c.h.b16 %v80
    %v493 = vunpack.c.l.b16 %v81
    %v494 = vunpack.c.l.b16 %v82
    %v495 = vunpack.c.h.b16 %v82
    %v496 = vunpack.c.l.b16 %v83
    %v497 = vunpack.c.l.b16 %v84
    %v498 = vunpack.c.h.b16 %v84
    %v499 = vunpack.c.l.b16 %v85
    %v500 = vunpack.c.l.b16 %v86
    %v501 = vunpack.c.h.b16 %v86
    %v502 = vunpack.c.l.b16 %v87
    %v503 = vunpack.c.l.b16 %v88
    %v504 = vunpack.c.h.b16 %v88
    %v505 = vunpack.c.l.b16 %v89
    %v506 = vunpack.c.l.b16 %v90
    %v507 = vunpack.c.h.b16 %v90
    %v508 = vunpack.c.l.b16 %v91
    %v509 = vunpack.c.l.b16 %v92
    %v510 = vunpack.c.h.b16 %v92
    %v511 = vunpack.c.l.b16 %v93
    %v512 = vunpack.c.l.b16 %v94
    %v513 = vunpack.c.h.b16 %v94
    %v514 = vunpack.c.l.b16 %v95
    %v515 = vunpack.c.l.b16 %v96
    %v516 = vunpack.c.h.b16 %v96
    %v517 = vunpack.c.l.b16 %v97
    %v518 = vunpack.c.l.b16 %v98
    %v519 = vunpack.c.h.b16 %v98
    %v520 = vunpack.c.l.b16 %v99
    %v521 = vunpack.c.l.b16 %v100
    %v522 = vunpack.c.h.b16 %v100
    %v523 = vunpack.c.l.b16 %v101
    %v524 = vunpack.c.l.b16 %v102
    %v525 = vunpack.c.h.b16 %v102
    %v526 = vunpack.c.l.b16 %v103
    %v527 = vunpack.c.l.b16 %v104
    %v528 = vunpack.c.h.b16 %v104
    %v529 = vunpack.c.l.b16 %v105
    %v530 = vunpack.c.l.b16 %v106
    %v531 = vunpack.c.h.b16 %v106
    %v532 = vunpack.c.l.b16 %v107
    %v533 = vunpack.c.l.b16 %v108
    %v534 = vunpack.c.h.b16 %v108
    %v535 = vunpack.c.l.b16 %v109
    %v536 = vunpack.c.l.b16 %v110
    %v537 = vunpack.c.h.b16 %v110
    %v538 = vunpack.c.l.b16 %v111
    %v539 = vunpack.c.l.b16 %v112
    %v540 = vunpack.c.h.b16 %v112
    %v541 = vunpack.c.l.b16 %v113
    %v542 = vunpack.c.l.b16 %v114
    %v543 = vunpack.c.h.b16 %v114
    %v544 = vunpack.c.l.b16 %v115
    %v545 = vunpack.c.l.b16 %v116
    %v546 = vunpack.c.h.b16 %v116
    %v547 = vunpack.c.l.b16 %v117
    %v548 = vunpack.c.l.b16 %v118
    %v549 = vunpack.c.h.b16 %v118
    %v550 = vunpack.c.l.b16 %v119
    %v551 = vunpack.c.l.b16 %v120
    %v552 = vunpack.c.h.b16 %v120
    %v553 = vunpack.c.l.b16 %v121
    %v554 = vunpack.c.l.b16 %v122
    %v555 = vunpack.c.h.b16 %v122
    %v556 = vunpack.c.l.b16 %v123
    %v557 = vunpack.c.l.b16 %v124
    %v558 = vunpack.c.h.b16 %v124
    %v559 = vunpack.c.l.b16 %v125
    %v560 = vunpack.c.l.b16 %v126
    %v561 = vunpack.c.h.b16 %v126
    %v562 = vunpack.c.l.b16 %v127
    %v563 = vunpack.c.l.b16 %v128
    %v564 = vunpack.c.h.b16 %v128
    %v565 = vunpack.c.l.b16 %v129
    %v566 = vunpack.c.l.b16 %v130
    %v567 = vunpack.c.h.b16 %v130
    %v568 = vunpack.c.l.b16 %v131
    %v569 = vunpack.c.l.b16 %v132
    %v570 = vunpack.c.h.b16 %v132
    %v571 = vunpack.c.l.b16 %v133
    %v572 = vunpack.c.l.b16 %v134
    %v573 = vunpack.c.h.b16 %v134
    %v574 = vunpack.c.l.b16 %v135
    %v575 = vunpack.c.l.b16 %v136
    %v576 = vunpack.c.h.b16 %v136
    %v577 = vunpack.c.l.b16 %v137
    %v578 = vunpack.c.l.b16 %v138
    %v579 = vunpack.c.h.b16 %v138
    %v580 = vunpack.c.l.b16 %v139
    %v581 = vunpack.c.l.b16 %v140
    %v582 = vunpack.c.h.b16 %v140
    %v583 = vunpack.c.l.b16 %v141
    %v584 = vunpack.c.l.b16 %v142
    %v585 = vunpack.c.h.b16 %v142
    %v586 = vunpack.c.l.b16 %v143
    %v587 = vunpack.c.l.b16 %v144
    %v588 = vunpack.c.h.b16 %v144
    %v589 = vunpack.c.l.b16 %v145
    %v590 = vunpack.c.l.b16 %v146
    %v591 = vunpack.c.h.b16 %v146
    %v592 = vunpack.c.l.b16 %v147
    %v593 = vunpack.c.l.b16 %v148
    %v594 = vunpack.c.h.b16 %v148
    %v595 = vunpack.c.l.b16 %v149
    %v596 = vunpack.c.l.b16 %v150
    %v597 = vunpack.c.h.b16 %v150
    %v598 = vunpack.c.l.b16 %v151
    %v599 = vunpack.c.l.b16 %v152
    %v600 = vunpack.c.h.b16 %v152
    %v601 = vunpack.c.l.b16 %v153
    %v602 = vunpack.c.l.b16 %v154
    %v603 = vunpack.c.h.b16 %v154
    %v604 = vunpack.c.l.b16 %v155
    %v605 = vunpack.c.l.b16 %v156
    %v606 = vunpack.c.h.b16 %v156
    %v607 = vunpack.c.l.b16 %v157
    %v608 = vunpack.c.l.b16 %v158
    %v609 = vunpack.c.h.b16 %v158
    %v610 = vunpack.c.l.b16 %v159
    %v611 = vunpack.c.l.b16 %v160
    %v612 = vunpack.c.h.b16 %v160
    %v613 = vunpack.c.l.b16 %v161
    %v614 = vunpack.c.l.b16 %v162
    %v615 = vunpack.c.h.b16 %v162
    %v616 = vunpack.c.l.b16 %v163
    %v617 = vunpack.c.l.b16 %v164
    %v618 = vunpack.c.h.b16 %v164
    %v619 = vunpack.c.l.b16 %v165
    %v620 = vunpack.c.l.b16 %v166
    %v621 = vunpack.c.h.b16 %v166
    %v622 = vunpack.c.l.b16 %v167
    %v623 = vunpack.c.l.b16 %v168
    %v624 = vunpack.c.h.b16 %v168
    %v625 = vunpack.c.l.b16 %v169
    %v626 = vunpack.c.l.b16 %v170
    %v627 = vunpack.c.h.b16 %v170
    %v628 = vunpack.c.l.b16 %v171
    %v629 = vunpack.c.l.b16 %v172
    %v630 = vunpack.c.h.b16 %v172
    %v631 = vunpack.c.l.b16 %v173
    %v632 = vunpack.c.l.b16 %v174
    %v633 = vunpack.c.h.b16 %v174
    %v634 = vunpack.c.l.b16 %v175
    %v635 = vunpack.c.l.b16 %v176
    %v636 = vunpack.c.h.b16 %v176
    %v637 = vunpack.c.l.b16 %v177
    %v638 = vunpack.c.l.b16 %v178
    %v639 = vunpack.c.h.b16 %v178
    %v640 = vunpack.c.l.b16 %v179
    %v641 = vunpack.c.l.b16 %v180
    %v642 = vunpack.c.h.b16 %v180
    %v643 = vunpack.c.l.b16 %v181
    %v644 = vunpack.c.l.b16 %v182
    %v645 = vunpack.c.h.b16 %v182
    %v646 = vunpack.c.l.b16 %v183
    %v647 = vunpack.c.l.b16 %v184
    %v648 = vunpack.c.h.b16 %v184
    %v649 = vunpack.c.l.b16 %v185
    %v650 = vunpack.c.l.b16 %v186
    %v651 = vunpack.c.h.b16 %v186
    %v652 = vunpack.c.l.b16 %v187
    %v653 = vunpack.c.l.b16 %v188
    %v654 = vunpack.c.h.b16 %v188
    %v655 = vunpack.c.l.b16 %v189
    %v656 = vunpack.c.l.b16 %v190
    %v657 = vunpack.c.h.b16 %v190
    %v658 = vunpack.c.l.b16 %v191
    %v659 = vunpack.c.l.b16 %v192
    %v660 = vunpack.c.h.b16 %v192
    %v661 = vunpack.c.l.b16 %v193
    %v662 = vunpack.c.l.b16 %v194
    %v663 = vunpack.c.h.b16 %v194
    %v664 = vunpack.c.l.b16 %v195
    %v665 = vunpack.c.l.b16 %v196
    %v666 = vunpack.c.h.b16 %v196
    %v667 = vunpack.c.l.b16 %v197
    %v668 = vunpack.c.l.b16 %v198
    %v669 = vunpack.c.h.b16 %v198
    %v670 = vunpack.c.l.b16 %v199
    %v671 = vunpack.c.l.b16 %v200
    %v672 = vunpack.c.h.b16 %v200
    %v673 = vunpack.c.l.b16 %v201
    %v674 = vunpack.c.l.b16 %v202
    %v675 = vunpack.c.h.b16 %v202
    %v676 = vunpack.c.l.b16 %v203
    %v677 = vunpack.c.l.b16 %v204
    %v678 = vunpack.c.h.b16 %v204
    %v679 = vunpack.c.l.b16 %v205
    %v680 = vunpack.c.l.b16 %v206
    %v681 = vunpack.c.h.b16 %v206
    %v682 = vunpack.c.l.b16 %v207
    %v683 = vunpack.c.l.b16 %v208
    %v684 = vunpack.c.h.b16 %v208
    %v685 = vunpack.c.l.b16 %v209
    %v686 = vunpack.c.l.b16 %v210
    %v687 = vunpack.c.h.b16 %v210
    %v688 = vunpack.c.l.b16 %v211
    %v689 = vunpack.c.l.b16 %v212
    %v690 = vunpack.c.h.b16 %v212
    %v691 = vunpack.c.l.b16 %v213
    %v692 = vunpack.c.l.b16 %v214
    %v693 = vunpack.c.h.b16 %v214
    %v694 = vunpack.c.l.b16 %v215
    %v695 = vunpack.c.l.b16 %v216
    %v696 = vunpack.c.h.b16 %v216
    %v697 = vunpack.c.l.b16 %v217
    %v698 = vunpack.c.l.b16 %v218
    %v699 = vunpack.c.h.b16 %v218
    %v700 = vunpack.c.l.b16 %v219
    %v701 = vunpack.c.l.b16 %v220
    %v702 = vunpack.c.h.b16 %v220
    %v703 = vunpack.c.l.b16 %v221
    %v704 = vunpack.c.l.b16 %v222
    %v705 = vunpack.c.h.b16 %v222
    %v706 = vunpack.c.l.b16 %v223
    %v707 = vunpack.c.l.b16 %v224
    %v708 = vunpack.c.h.b16 %v224
    %v709 = vunpack.c.l.b16 %v225
    %v710 = vunpack.c.l.b16 %v226
    %v711 = vunpack.c.h.b16 %v226
    %v712 = vunpack.c.l.b16 %v227
    %v713 = vunpack.c.l.b16 %v228
    %v714 = vunpack.c.h.b16 %v228
    %v715 = vunpack.c.l.b16 %v229
    %v716 = vunpack.c.l.b16 %v230
    %v717 = vunpack.c.h.b16 %v230
    %v718 = vunpack.c.l.b16 %v231
    %v719 = vunpack.c.l.b16 %v232
    %v720 = vunpack.c.h.b16 %v232
    %v721 = vunpack.c.l.b16 %v233
    %v722 = vunpack.c.l.b16 %v234
    %v723 = vunpack.c.h.b16 %v234
    %v724 = vunpack.c.l.b16 %v235
    %v725 = vunpack.c.l.b16 %v236
    %v726 = vunpack.c.h.b16 %v236
    %v727 = vunpack.c.l.b16 %v237
    %v728 = vunpack.c.l.b16 %v238
    %v729 = vunpack.c.h.b16 %v238
    %v730 = vunpack.c.l.b16 %v239
    %v731 = vunpack.c.l.b16 %v240
    %v732 = vunpack.c.h.b16 %v240
    %v733 = vunpack.c.l.b16 %v241
    %v734 = vunpack.c.l.b16 %v242
    %v735 = vunpack.c.h.b16 %v242
    %v736 = vunpack.c.l.b16 %v243
    %v737 = vunpack.c.l.b16 %v244
    %v738 = vunpack.c.h.b16 %v244
    %v739 = vunpack.c.l.b16 %v245
    %v740 = vunpack.c.l.b16 %v246
    %v741 = vunpack.c.h.b16 %v246
    %v742 = vunpack.c.l.b16 %v247
    %v743 = vunpack.c.l.b16 %v248
    %v744 = vunpack.c.h.b16 %v248
    %v745 = vunpack.c.l.b16 %v249
    %v746 = vunpack.c.l.b16 %v250
    %v747 = vunpack.c.h.b16 %v250
    %v748 = vunpack.c.l.b16 %v251
    %v749 = vunpack.c.l.b16 %v252
    %v750 = vunpack.c.h.b16 %v252
    %v751 = vunpack.c.l.b16 %v253
    %v752 = vpack.c.b16 %v461, %v458
    %v753 = vpack.c.b16 %v462, %v459
    %v754 = vpack.c.b16 %v463, %v460
    %v755 = vpack.c.b16 %v467, %v464
    %v756 = vpack.c.b16 %v468, %v465
    %v757 = vpack.c.b16 %v469, %v466
    %v758 = vpack.c.b16 %v473, %v470
    %v759 = vpack.c.b16 %v474, %v471
    %v760 = vpack.c.b16 %v475, %v472
    %v761 = vpack.c.b16 %v479, %v476
    %v762 = vpack.c.b16 %v480, %v477
    %v763 = vpack.c.b16 %v481, %v478
    %v764 = vpack.c.b16 %v485, %v482
    %v765 = vpack.c.b16 %v486, %v483
    %v766 = vpack.c.b16 %v487, %v484
    %v767 = vpack.c.b16 %v491, %v488
    %v768 = vpack.c.b16 %v492, %v489
    %v769 = vpack.c.b16 %v493, %v490
    %v770 = vpack.c.b16 %v497, %v494
    %v771 = vpack.c.b16 %v498, %v495
    %v772 = vpack.c.b16 %v499, %v496
    %v773 = vpack.c.b16 %v503, %v500
    %v774 = vpack.c.b16 %v504, %v501
    %v775 = vpack.c.b16 %v505, %v502
    %v776 = vpack.c.b16 %v509, %v506
    %v777 = vpack.c.b16 %v510, %v507
    %v778 = vpack.c.b16 %v511, %v508
    %v779 = vpack.c.b16 %v515, %v512
    %v780 = vpack.c.b16 %v516, %v513
    %v781 = vpack.c.b16 %v517, %v514
    %v782 = vpack.c.b16 %v521, %v518
    %v783 = vpack.c.b16 %v522, %v519
    %v784 = vpack.c.b16 %v523, %v520
    %v785 = vpack.c.b16 %v527, %v524
    %v786 = vpack.c.b16 %v528, %v525
    %v787 = vpack.c.b16 %v529, %v526
    %v788 = vpack.c.b16 %v533, %v530
    %v789 = vpack.c.b16 %v534, %v531
    %v790 = vpack.c.b16 %v535, %v532
    %v791 = vpack.c.b16 %v539, %v536
    %v792 = vpack.c.b16 %v540, %v537
    %v793 = vpack.c.b16 %v541, %v538
    %v794 = vpack.c.b16 %v545, %v542
    %v795 = vpack.c.b16 %v546, %v543
    %v796 = vpack.c.b16 %v547, %v544
    %v797 = vpack.c.b16 %v551, %v548
    %v798 = vpack.c.b16 %v552, %v549
    %v799 = vpack.c.b16 %v553, %v550
    %v800 = vpack.c.b16 %v557, %v554
    %v801 = vpack.c.b16 %v558, %v555
    %v802 = vpack.c.b16 %v559, %v556
    %v803 = vpack.c.b16 %v563, %v560
    %v804 = vpack.c.b16 %v564, %v561
    %v805 = vpack.c.b16 %v565, %v562
    %v806 = vpack.c.b16 %v569, %v566
    %v807 = vpack.c.b16 %v570, %v567
    %v808 = vpack.c.b16 %v571, %v568
    %v809 = vpack.c.b16 %v575, %v572
    %v810 = vpack.c.b16 %v576, %v573
    %v811 = vpack.c.b16 %v577, %v574
    %v812 = vpack.c.b16 %v581, %v578
    %v813 = vpack.c.b16 %v582, %v579
    %v814 = vpack.c.b16 %v583, %v580
    %v815 = vpack.c.b16 %v587, %v584
    %v816 = vpack.c.b16 %v588, %v585
    %v817 = vpack.c.b16 %v589, %v586
    %v818 = vpack.c.b16 %v593, %v590
    %v819 = vpack.c.b16 %v594, %v591
    %v820 = vpack.c.b16 %v595, %v592
    %v821 = vpack.c.b16 %v599, %v596
    %v822 = vpack.c.b16 %v600, %v597
    %v823 = vpack.c.b16 %v601, %v598
    %v824 = vpack.c.b16 %v605, %v602
    %v825 = vpack.c.b16 %v606, %v603
    %v826 = vpack.c.b16 %v607, %v604
    %v827 = vpack.c.b16 %v611, %v608
    %v828 = vpack.c.b16 %v612, %v609
    %v829 = vpack.c.b16 %v613, %v610
    %v830 = vpack.c.b16 %v617, %v614
    %v831 = vpack.c.b16 %v618, %v615
    %v832 = vpack.c.b16 %v619, %v616
    %v833 = vpack.c.b16 %v623, %v620
    %v834 = vpack.c.b16 %v624, %v621
    %v835 = vpack.c.b16 %v625, %v622
    %v836 = vpack.c.b16 %v629, %v626
    %v837 = vpack.c.b16 %v630, %v627
    %v838 = vpack.c.b16 %v631, %v628
    %v839 = vpack.c.b16 %v635, %v632
    %v840 = vpack.c.b16 %v636, %v633
    %v841 = vpack.c.b16 %v637, %v634
    %v842 = vpack.c.b16 %v641, %v638
    %v843 = vpack.c.b16 %v642, %v639
    %v844 = vpack.c.b16 %v643, %v640
    %v845 = vpack.c.b16 %v647, %v644
    %v846 = vpack.c.b16 %v648, %v645
    %v847 = vpack.c.b16 %v649, %v646
    %v848 = vpack.c.b16 %v653, %v650
    %v849 = vpack.c.b16 %v654, %v651
    %v850 = vpack.c.b16 %v655, %v652
    %v851 = vpack.c.b16 %v659, %v656
    %v852 = vpack.c.b16 %v660, %v657
    %v853 = vpack.c.b16 %v661, %v658
    %v854 = vpack.c.b16 %v665, %v662
    %v855 = vpack.c.b16 %v666, %v663
    %v856 = vpack.c.b16 %v667, %v664
    %v857 = vpack.c.b16 %v671, %v668
    %v858 = vpack.c.b16 %v672, %v669
    %v859 = vpack.c.b16 %v673, %v670
    %v860 = vpack.c.b16 %v677, %v674
    %v861 = vpack.c.b16 %v678, %v675
    %v862 = vpack.c.b16 %v679, %v676
    %v863 = vpack.c.b16 %v683, %v680
    %v864 = vpack.c.b16 %v684, %v681
    %v865 = vpack.c.b16 %v685, %v682
    %v866 = vpack.c.b16 %v689, %v686
    %v867 = vpack.c.b16 %v690, %v687
    %v868 = vpack.c.b16 %v691, %v688
    %v869 = vpack.c.b16 %v695, %v692
    %v870 = vpack.c.b16 %v696, %v693
    %v871 = vpack.c.b16 %v697, %v694
    %v872 = vpack.c.b16 %v701, %v698
    %v873 = vpack.c.b16 %v702, %v699
    %v874 = vpack.c.b16 %v703, %v700
    %v875 = vpack.c.b16 %v707, %v704
    %v876 = vpack.c.b16 %v708, %v705
    %v877 = vpack.c.b16 %v709, %v706
    %v878 = vpack.c.b16 %v713, %v710
    %v879 = vpack.c.b16 %v714, %v711
    %v880 = vpack.c.b16 %v715, %v712
    %v881 = vpack.c.b16 %v719, %v716
    %v882 = vpack.c.b16 %v720, %v717
    %v883 = vpack.c.b16 %v721, %v718
    %v884 = vpack.c.b16 %v725, %v722
    %v885 = vpack.c.b16 %v726, %v723
    %v886 = vpack.c.b16 %v727, %v724
    %v887 = vpack.c.b16 %v731, %v728
    %v888 = vpack.c.b16 %v732, %v729
    %v889 = vpack.c.b16 %v733, %v730
    %v890 = vpack.c.b16 %v737, %v734
    %v891 = vpack.c.b16 %v738, %v735
    %v892 = vpack.c.b16 %v739, %v736
    %v893 = vpack.c.b16 %v743, %v740
    %v894 = vpack.c.b16 %v744, %v741
    %v895 = vpack.c.b16 %v745, %v742
    %v896 = vpack.c.b16 %v749, %v746
    %v897 = vpack.c.b16 %v750, %v747
    %v898 = vpack.c.b16 %v751, %v748
    %vm1046 = vcmask 130048
    %v1048 = vsel %vm1046, %v57, 0
    %1050 = vmatpush.bf16.msra.mxu0 %v773
    %1051 = vmatpush.bf16.msra.mxu0 %v770
    %1052 = vmatpush.bf16.msra.mxu0 %v767
    %1053 = vmatpush.bf16.msra.mxu0 %v764
    %1054 = vmatpush.bf16.msra.mxu0 %v761
    %1055 = vmatpush.bf16.msra.mxu0 %v758
    %1056 = vmatpush.bf16.msra.mxu0 %v755
    %1057 = vmatpush.bf16.msra.mxu0 %v752
    %1058 = vmatmul.bf16.gmra.mxu0 %v51
    %v1059 = vpop.f32.mrf.mxu0
    %v1060 = vadd.f32 %v256, %v1059
    %v1061 = vpop.f32.mrf.mxu0
    %1062 = vdwg.mxu0
    %1063 = vmatpush.bf16.msra.mxu0 %v797
    %1064 = vmatpush.bf16.msra.mxu0 %v794
    %1065 = vmatpush.bf16.msra.mxu0 %v791
    %1066 = vmatpush.bf16.msra.mxu0 %v788
    %1067 = vmatpush.bf16.msra.mxu0 %v785
    %1068 = vmatpush.bf16.msra.mxu0 %v782
    %1069 = vmatpush.bf16.msra.mxu0 %v779
    %1070 = vmatpush.bf16.msra.mxu0 %v776
    %1071 = vmatmul.bf16.gmra.mxu0 %v52
    %v1072 = vpop.f32.mrf.mxu0
    %v1073 = vadd.f32 %v1060, %v1072
    %v1074 = vpop.f32.mrf.mxu0
    %1075 = vdwg.mxu0
    %1076 = vmatpush.bf16.msra.mxu0 %v821
    %1077 = vmatpush.bf16.msra.mxu0 %v818
    %1078 = vmatpush.bf16.msra.mxu0 %v815
    %1079 = vmatpush.bf16.msra.mxu0 %v812
    %1080 = vmatpush.bf16.msra.mxu0 %v809
    %1081 = vmatpush.bf16.msra.mxu0 %v806
    %1082 = vmatpush.bf16.msra.mxu0 %v803
    %1083 = vmatpush.bf16.msra.mxu0 %v800
    %1084 = vmatmul.bf16.gmra.mxu0 %v53
    %v1085 = vpop.f32.mrf.mxu0
    %v1086 = vadd.f32 %v1073, %v1085
    %v1087 = vpop.f32.mrf.mxu0
    %1088 = vdwg.mxu0
    %1089 = vmatpush.bf16.msra.mxu0 %v845
    %1090 = vmatpush.bf16.msra.mxu0 %v842
    %1091 = vmatpush.bf16.msra.mxu0 %v839
    %1092 = vmatpush.bf16.msra.mxu0 %v836
    %1093 = vmatpush.bf16.msra.mxu0 %v833
    %1094 = vmatpush.bf16.msra.mxu0 %v830
    %1095 = vmatpush.bf16.msra.mxu0 %v827
    %1096 = vmatpush.bf16.msra.mxu0 %v824
    %1097 = vmatmul.bf16.gmra.mxu0 %v54
    %v1098 = vpop.f32.mrf.mxu0
    %v1099 = vadd.f32 %v1086, %v1098
    %v1100 = vpop.f32.mrf.mxu0
    %1101 = vdwg.mxu0
    %1102 = vmatpush.bf16.msra.mxu0 %v869
    %1103 = vmatpush.bf16.msra.mxu0 %v866
    %1104 = vmatpush.bf16.msra.mxu0 %v863
    %1105 = vmatpush.bf16.msra.mxu0 %v860
    %1106 = vmatpush.bf16.msra.mxu0 %v857
    %1107 = vmatpush.bf16.msra.mxu0 %v854
    %1108 = vmatpush.bf16.msra.mxu0 %v851
    %1109 = vmatpush.bf16.msra.mxu0 %v848
    %1110 = vmatmul.bf16.gmra.mxu0 %v55
    %v1111 = vpop.f32.mrf.mxu0
    %v1112 = vadd.f32 %v1099, %v1111
    %v1113 = vpop.f32.mrf.mxu0
    %1114 = vdwg.mxu0
    %1115 = vmatpush.bf16.msra.mxu0 %v893
    %1116 = vmatpush.bf16.msra.mxu0 %v890
    %1117 = vmatpush.bf16.msra.mxu0 %v887
    %1118 = vmatpush.bf16.msra.mxu0 %v884
    %1119 = vmatpush.bf16.msra.mxu0 %v881
    %1120 = vmatpush.bf16.msra.mxu0 %v878
    %1121 = vmatpush.bf16.msra.mxu0 %v875
    %1122 = vmatpush.bf16.msra.mxu0 %v872
    %1123 = vmatmul.bf16.gmra.mxu0 %v56
    %v1124 = vpop.f32.mrf.mxu0
    %v1125 = vadd.f32 %v1112, %v1124
    %v1126 = vpop.f32.mrf.mxu0
    %1127 = vdwg.mxu0
    %1128 = vmatpush.bf16.msra.mxu0 0
    %1129 = vmatpush.bf16.msra.mxu0 0
    %1130 = vmatpush.bf16.msra.mxu0 0
    %1131 = vmatpush.bf16.msra.mxu0 0
    %1132 = vmatpush.bf16.msra.mxu0 0
    %1133 = vmatpush.bf16.msra.mxu0 0
    %1134 = vmatpush.bf16.msra.mxu0 0
    %1135 = vmatpush.bf16.msra.mxu0 %v896
    %1136 = vmatmul.bf16.gmra.mxu0 %v1048
    %v1137 = vpop.f32.mrf.mxu0
    %v1138 = vadd.f32 %v1125, %v1137
    %v1139 = vpop.f32.mrf.mxu0
    %1140 = vdwg.mxu0
    %1141 = vmatpush.bf16.msra.mxu0 %v774
    %1142 = vmatpush.bf16.msra.mxu0 %v771
    %1143 = vmatpush.bf16.msra.mxu0 %v768
    %1144 = vmatpush.bf16.msra.mxu0 %v765
    %1145 = vmatpush.bf16.msra.mxu0 %v762
    %1146 = vmatpush.bf16.msra.mxu0 %v759
    %1147 = vmatpush.bf16.msra.mxu0 %v756
    %1148 = vmatpush.bf16.msra.mxu0 %v753
    %1149 = vmatmul.bf16.gmra.mxu0 %v51
    %v1150 = vpop.f32.mrf.mxu0
    %v1151 = vadd.f32 %v257, %v1150
    %v1152 = vpop.f32.mrf.mxu0
    %1153 = vdwg.mxu0
    %1154 = vmatpush.bf16.msra.mxu0 %v798
    %1155 = vmatpush.bf16.msra.mxu0 %v795
    %1156 = vmatpush.bf16.msra.mxu0 %v792
    %1157 = vmatpush.bf16.msra.mxu0 %v789
    %1158 = vmatpush.bf16.msra.mxu0 %v786
    %1159 = vmatpush.bf16.msra.mxu0 %v783
    %1160 = vmatpush.bf16.msra.mxu0 %v780
    %1161 = vmatpush.bf16.msra.mxu0 %v777
    %1162 = vmatmul.bf16.gmra.mxu0 %v52
    %v1163 = vpop.f32.mrf.mxu0
    %v1164 = vadd.f32 %v1151, %v1163
    %v1165 = vpop.f32.mrf.mxu0
    %1166 = vdwg.mxu0
    %1167 = vmatpush.bf16.msra.mxu0 %v822
    %1168 = vmatpush.bf16.msra.mxu0 %v819
    %1169 = vmatpush.bf16.msra.mxu0 %v816
    %1170 = vmatpush.bf16.msra.mxu0 %v813
    %1171 = vmatpush.bf16.msra.mxu0 %v810
    %1172 = vmatpush.bf16.msra.mxu0 %v807
    %1173 = vmatpush.bf16.msra.mxu0 %v804
    %1174 = vmatpush.bf16.msra.mxu0 %v801
    %1175 = vmatmul.bf16.gmra.mxu0 %v53
    %v1176 = vpop.f32.mrf.mxu0
    %v1177 = vadd.f32 %v1164, %v1176
    %v1178 = vpop.f32.mrf.mxu0
    %1179 = vdwg.mxu0
    %1180 = vmatpush.bf16.msra.mxu0 %v846
    %1181 = vmatpush.bf16.msra.mxu0 %v843
    %1182 = vmatpush.bf16.msra.mxu0 %v840
    %1183 = vmatpush.bf16.msra.mxu0 %v837
    %1184 = vmatpush.bf16.msra.mxu0 %v834
    %1185 = vmatpush.bf16.msra.mxu0 %v831
    %1186 = vmatpush.bf16.msra.mxu0 %v828
    %1187 = vmatpush.bf16.msra.mxu0 %v825
    %1188 = vmatmul.bf16.gmra.mxu0 %v54
    %v1189 = vpop.f32.mrf.mxu0
    %v1190 = vadd.f32 %v1177, %v1189
    %v1191 = vpop.f32.mrf.mxu0
    %1192 = vdwg.mxu0
    %1193 = vmatpush.bf16.msra.mxu0 %v870
    %1194 = vmatpush.bf16.msra.mxu0 %v867
    %1195 = vmatpush.bf16.msra.mxu0 %v864
    %1196 = vmatpush.bf16.msra.mxu0 %v861
    %1197 = vmatpush.bf16.msra.mxu0 %v858
    %1198 = vmatpush.bf16.msra.mxu0 %v855
    %1199 = vmatpush.bf16.msra.mxu0 %v852
    %1200 = vmatpush.bf16.msra.mxu0 %v849
    %1201 = vmatmul.bf16.gmra.mxu0 %v55
    %v1202 = vpop.f32.mrf.mxu0
    %v1203 = vadd.f32 %v1190, %v1202
    %v1204 = vpop.f32.mrf.mxu0
    %1205 = vdwg.mxu0
    %1206 = vmatpush.bf16.msra.mxu0 %v894
    %1207 = vmatpush.bf16.msra.mxu0 %v891
    %1208 = vmatpush.bf16.msra.mxu0 %v888
    %1209 = vmatpush.bf16.msra.mxu0 %v885
    %1210 = vmatpush.bf16.msra.mxu0 %v882
    %1211 = vmatpush.bf16.msra.mxu0 %v879
    %1212 = vmatpush.bf16.msra.mxu0 %v876
    %1213 = vmatpush.bf16.msra.mxu0 %v873
    %1214 = vmatmul.bf16.gmra.mxu0 %v56
    %v1215 = vpop.f32.mrf.mxu0
    %v1216 = vadd.f32 %v1203, %v1215
    %v1217 = vpop.f32.mrf.mxu0
    %1218 = vdwg.mxu0
    %1219 = vmatpush.bf16.msra.mxu0 0
    %1220 = vmatpush.bf16.msra.mxu0 0
    %1221 = vmatpush.bf16.msra.mxu0 0
    %1222 = vmatpush.bf16.msra.mxu0 0
    %1223 = vmatpush.bf16.msra.mxu0 0
    %1224 = vmatpush.bf16.msra.mxu0 0
    %1225 = vmatpush.bf16.msra.mxu0 0
    %1226 = vmatpush.bf16.msra.mxu0 %v897
    %1227 = vmatmul.bf16.gmra.mxu0 %v1048
    %v1228 = vpop.f32.mrf.mxu0
    %v1229 = vadd.f32 %v1216, %v1228
    %v1230 = vpop.f32.mrf.mxu0
    %1231 = vdwg.mxu0
    %1232 = vmatpush.bf16.msra.mxu0 %v775
    %1233 = vmatpush.bf16.msra.mxu0 %v772
    %1234 = vmatpush.bf16.msra.mxu0 %v769
    %1235 = vmatpush.bf16.msra.mxu0 %v766
    %1236 = vmatpush.bf16.msra.mxu0 %v763
    %1237 = vmatpush.bf16.msra.mxu0 %v760
    %1238 = vmatpush.bf16.msra.mxu0 %v757
    %1239 = vmatpush.bf16.msra.mxu0 %v754
    %1240 = vmatmul.bf16.gmra.mxu0 %v51
    %v1241 = vpop.f32.mrf.mxu0
    %v1242 = vadd.f32 %v258, %v1241
    %v1243 = vpop.f32.mrf.mxu0
    %1244 = vdwg.mxu0
    %1245 = vmatpush.bf16.msra.mxu0 %v799
    %1246 = vmatpush.bf16.msra.mxu0 %v796
    %1247 = vmatpush.bf16.msra.mxu0 %v793
    %1248 = vmatpush.bf16.msra.mxu0 %v790
    %1249 = vmatpush.bf16.msra.mxu0 %v787
    %1250 = vmatpush.bf16.msra.mxu0 %v784
    %1251 = vmatpush.bf16.msra.mxu0 %v781
    %1252 = vmatpush.bf16.msra.mxu0 %v778
    %1253 = vmatmul.bf16.gmra.mxu0 %v52
    %v1254 = vpop.f32.mrf.mxu0
    %v1255 = vadd.f32 %v1242, %v1254
    %v1256 = vpop.f32.mrf.mxu0
    %1257 = vdwg.mxu0
    %1258 = vmatpush.bf16.msra.mxu0 %v823
    %1259 = vmatpush.bf16.msra.mxu0 %v820
    %1260 = vmatpush.bf16.msra.mxu0 %v817
    %1261 = vmatpush.bf16.msra.mxu0 %v814
    %1262 = vmatpush.bf16.msra.mxu0 %v811
    %1263 = vmatpush.bf16.msra.mxu0 %v808
    %1264 = vmatpush.bf16.msra.mxu0 %v805
    %1265 = vmatpush.bf16.msra.mxu0 %v802
    %1266 = vmatmul.bf16.gmra.mxu0 %v53
    %v1267 = vpop.f32.mrf.mxu0
    %v1268 = vadd.f32 %v1255, %v1267
    %v1269 = vpop.f32.mrf.mxu0
    %1270 = vdwg.mxu0
    %1271 = vmatpush.bf16.msra.mxu0 %v847
    %1272 = vmatpush.bf16.msra.mxu0 %v844
    %1273 = vmatpush.bf16.msra.mxu0 %v841
    %1274 = vmatpush.bf16.msra.mxu0 %v838
    %1275 = vmatpush.bf16.msra.mxu0 %v835
    %1276 = vmatpush.bf16.msra.mxu0 %v832
    %1277 = vmatpush.bf16.msra.mxu0 %v829
    %1278 = vmatpush.bf16.msra.mxu0 %v826
    %1279 = vmatmul.bf16.gmra.mxu0 %v54
    %v1280 = vpop.f32.mrf.mxu0
    %v1281 = vadd.f32 %v1268, %v1280
    %v1282 = vpop.f32.mrf.mxu0
    %1283 = vdwg.mxu0
    %1284 = vmatpush.bf16.msra.mxu0 %v871
    %1285 = vmatpush.bf16.msra.mxu0 %v868
    %1286 = vmatpush.bf16.msra.mxu0 %v865
    %1287 = vmatpush.bf16.msra.mxu0 %v862
    %1288 = vmatpush.bf16.msra.mxu0 %v859
    %1289 = vmatpush.bf16.msra.mxu0 %v856
    %1290 = vmatpush.bf16.msra.mxu0 %v853
    %1291 = vmatpush.bf16.msra.mxu0 %v850
    %1292 = vmatmul.bf16.gmra.mxu0 %v55
    %v1293 = vpop.f32.mrf.mxu0
    %v1294 = vadd.f32 %v1281, %v1293
    %v1295 = vpop.f32.mrf.mxu0
    %1296 = vdwg.mxu0
    %1297 = vmatpush.bf16.msra.mxu0 %v895
    %1298 = vmatpush.bf16.msra.mxu0 %v892
    %1299 = vmatpush.bf16.msra.mxu0 %v889
    %1300 = vmatpush.bf16.msra.mxu0 %v886
    %1301 = vmatpush.bf16.msra.mxu0 %v883
    %1302 = vmatpush.bf16.msra.mxu0 %v880
    %1303 = vmatpush.bf16.msra.mxu0 %v877
    %1304 = vmatpush.bf16.msra.mxu0 %v874
    %1305 = vmatmul.bf16.gmra.mxu0 %v56
    %v1306 = vpop.f32.mrf.mxu0
    %v1307 = vadd.f32 %v1294, %v1306
    %v1308 = vpop.f32.mrf.mxu0
    %1309 = vdwg.mxu0
    %1310 = vmatpush.bf16.msra.mxu0 0
    %1311 = vmatpush.bf16.msra.mxu0 0
    %1312 = vmatpush.bf16.msra.mxu0 0
    %1313 = vmatpush.bf16.msra.mxu0 0
    %1314 = vmatpush.bf16.msra.mxu0 0
    %1315 = vmatpush.bf16.msra.mxu0 0
    %1316 = vmatpush.bf16.msra.mxu0 0
    %1317 = vmatpush.bf16.msra.mxu0 %v898
    %1318 = vmatmul.bf16.gmra.mxu0 %v1048
    %v1319 = vpop.f32.mrf.mxu0
    %v1320 = vadd.f32 %v1307, %v1319
    %v1321 = vpop.f32.mrf.mxu0
    %1322 = vdwg.mxu0
    %v1323 = vmax.f32 %v1138, 0.0
    %v1324 = vmax.f32 %v1229, 0.0
    %v1325 = vmax.f32 %v1320, 0.0
    %v1326 = vpack.c.bf16 %v1323, %v1323
    %v1327 = vpack.c.bf16 %v1324, %v1324
    %v1328 = vpack.c.bf16 %v1325, %v1325
    %v1329 = vld [vmem:[%s3] sm:$0xf]
    %v1330 = vld [vmem:[%s3 + $0x4] sm:$0xf]
    %v1331 = vld [vmem:[%s3 + $0x8] sm:$0xf]
    %v1332 = vld [vmem:[%s3 + $0xc] sm:$0xf]
    %v1333 = vld [vmem:[%s3 + $0x10] sm:$0xf]
    %v1334 = vld [vmem:[%s3 + $0x14] sm:$0xf]
    %v1335 = vld [vmem:[%s3 + $0x18] sm:$0xf]
    %v1336 = vld [vmem:[%s3 + $0x1c] sm:$0xf]
    %v1337 = vld [vmem:[%s3 + $0x20] sm:$0xf]
    %v1338 = vld [vmem:[%s3 + $0x24] sm:$0xf]
    %v1339 = vld [vmem:[%s3 + $0x28] sm:$0xf]
    %v1340 = vld [vmem:[%s3 + $0x2c] sm:$0xf]
    %v1341 = vld [vmem:[%s3 + $0x30] sm:$0xf]
    %v1342 = vld [vmem:[%s3 + $0x34] sm:$0xf]
    %v1343 = vld [vmem:[%s3 + $0x38] sm:$0xf]
    %v1344 = vld [vmem:[%s3 + $0x3c] sm:$0xf]
    %v1345 = vld [vmem:[%s3 + $0x40] sm:$0xf]
    %v1346 = vld [vmem:[%s3 + $0x44] sm:$0xf]
    %v1347 = vld [vmem:[%s3 + $0x48] sm:$0xf]
    %v1348 = vld [vmem:[%s3 + $0x4c] sm:$0xf]
    %v1349 = vld [vmem:[%s3 + $0x50] sm:$0xf]
    %v1350 = vld [vmem:[%s3 + $0x54] sm:$0xf]
    %v1351 = vld [vmem:[%s3 + $0x58] sm:$0xf]
    %v1352 = vld [vmem:[%s3 + $0x5c] sm:$0xf]
    %v1353 = vld [vmem:[%s3 + $0x60] sm:$0xf]
    %v1354 = vld [vmem:[%s3 + $0x64] sm:$0xf]
    %v1355 = vld [vmem:[%s3 + $0x68] sm:$0xf]
    %v1356 = vld [vmem:[%s3 + $0x6c] sm:$0xf]
    %v1357 = vld [vmem:[%s3 + $0x70] sm:$0xf]
    %v1358 = vld [vmem:[%s3 + $0x74] sm:$0xf]
    %v1359 = vld [vmem:[%s3 + $0x78] sm:$0xf]
    %v1360 = vld [vmem:[%s3 + $0x7c] sm:$0xf]
    %v1361 = vld [vmem:[%s3 + $0x80] sm:$0xf]
    %v1362 = vld [vmem:[%s3 + $0x84] sm:$0xf]
    %v1363 = vld [vmem:[%s3 + $0x88] sm:$0xf]
    %v1364 = vld [vmem:[%s3 + $0x8c] sm:$0xf]
    %v1365 = vld [vmem:[%s3 + $0x90] sm:$0xf]
    %v1366 = vld [vmem:[%s3 + $0x94] sm:$0xf]
    %v1367 = vld [vmem:[%s3 + $0x98] sm:$0xf]
    %v1368 = vld [vmem:[%s3 + $0x9c] sm:$0xf]
    %v1369 = vld [vmem:[%s3 + $0xa0] sm:$0xf]
    %v1370 = vld [vmem:[%s3 + $0xa4] sm:$0xf]
    %v1371 = vld [vmem:[%s3 + $0xa8] sm:$0xf]
    %v1372 = vld [vmem:[%s3 + $0xac] sm:$0xf]
    %v1373 = vld [vmem:[%s3 + $0xb0] sm:$0xf]
    %v1374 = vld [vmem:[%s3 + $0xb4] sm:$0xf]
    %v1375 = vld [vmem:[%s3 + $0xb8] sm:$0xf]
    %v1376 = vld [vmem:[%s3 + $0xbc] sm:$0xf]
    %v1377 = vld [vmem:[%s4] sm:$0x1]
    %v1379 = vperm.slane %v1377, 0
    %v1429 = vunpack.c.l.b16 %v1329
    %v1430 = vunpack.c.l.b16 %v1330
    %v1431 = vunpack.c.l.b16 %v1331
    %v1432 = vunpack.c.l.b16 %v1332
    %v1433 = vunpack.c.l.b16 %v1333
    %v1434 = vunpack.c.l.b16 %v1334
    %v1435 = vunpack.c.l.b16 %v1335
    %v1436 = vunpack.c.l.b16 %v1336
    %v1437 = vunpack.c.l.b16 %v1337
    %v1438 = vunpack.c.l.b16 %v1338
    %v1439 = vunpack.c.l.b16 %v1339
    %v1440 = vunpack.c.l.b16 %v1340
    %v1441 = vunpack.c.l.b16 %v1341
    %v1442 = vunpack.c.l.b16 %v1342
    %v1443 = vunpack.c.l.b16 %v1343
    %v1444 = vunpack.c.l.b16 %v1344
    %v1445 = vunpack.c.l.b16 %v1345
    %v1446 = vunpack.c.l.b16 %v1346
    %v1447 = vunpack.c.l.b16 %v1347
    %v1448 = vunpack.c.l.b16 %v1348
    %v1449 = vunpack.c.l.b16 %v1349
    %v1450 = vunpack.c.l.b16 %v1350
    %v1451 = vunpack.c.l.b16 %v1351
    %v1452 = vunpack.c.l.b16 %v1352
    %v1453 = vunpack.c.l.b16 %v1353
    %v1454 = vunpack.c.l.b16 %v1354
    %v1455 = vunpack.c.l.b16 %v1355
    %v1456 = vunpack.c.l.b16 %v1356
    %v1457 = vunpack.c.l.b16 %v1357
    %v1458 = vunpack.c.l.b16 %v1358
    %v1459 = vunpack.c.l.b16 %v1359
    %v1460 = vunpack.c.l.b16 %v1360
    %v1461 = vunpack.c.l.b16 %v1361
    %v1462 = vunpack.c.l.b16 %v1362
    %v1463 = vunpack.c.l.b16 %v1363
    %v1464 = vunpack.c.l.b16 %v1364
    %v1465 = vunpack.c.l.b16 %v1365
    %v1466 = vunpack.c.l.b16 %v1366
    %v1467 = vunpack.c.l.b16 %v1367
    %v1468 = vunpack.c.l.b16 %v1368
    %v1469 = vunpack.c.l.b16 %v1369
    %v1470 = vunpack.c.l.b16 %v1370
    %v1471 = vunpack.c.l.b16 %v1371
    %v1472 = vunpack.c.l.b16 %v1372
    %v1473 = vunpack.c.l.b16 %v1373
    %v1474 = vunpack.c.l.b16 %v1374
    %v1475 = vunpack.c.l.b16 %v1375
    %v1476 = vunpack.c.l.b16 %v1376
    %v1477 = vpack.c.b16 %v1430, %v1429
    %v1478 = vpack.c.b16 %v1432, %v1431
    %v1479 = vpack.c.b16 %v1434, %v1433
    %v1480 = vpack.c.b16 %v1436, %v1435
    %v1481 = vpack.c.b16 %v1438, %v1437
    %v1482 = vpack.c.b16 %v1440, %v1439
    %v1483 = vpack.c.b16 %v1442, %v1441
    %v1484 = vpack.c.b16 %v1444, %v1443
    %v1485 = vpack.c.b16 %v1446, %v1445
    %v1486 = vpack.c.b16 %v1448, %v1447
    %v1487 = vpack.c.b16 %v1450, %v1449
    %v1488 = vpack.c.b16 %v1452, %v1451
    %v1489 = vpack.c.b16 %v1454, %v1453
    %v1490 = vpack.c.b16 %v1456, %v1455
    %v1491 = vpack.c.b16 %v1458, %v1457
    %v1492 = vpack.c.b16 %v1460, %v1459
    %v1493 = vpack.c.b16 %v1462, %v1461
    %v1494 = vpack.c.b16 %v1464, %v1463
    %v1495 = vpack.c.b16 %v1466, %v1465
    %v1496 = vpack.c.b16 %v1468, %v1467
    %v1497 = vpack.c.b16 %v1470, %v1469
    %v1498 = vpack.c.b16 %v1472, %v1471
    %v1499 = vpack.c.b16 %v1474, %v1473
    %v1500 = vpack.c.b16 %v1476, %v1475
    %1525 = vmatpush.bf16.msra.mxu0 %v1484
    %1526 = vmatpush.bf16.msra.mxu0 %v1483
    %1527 = vmatpush.bf16.msra.mxu0 %v1482
    %1528 = vmatpush.bf16.msra.mxu0 %v1481
    %1529 = vmatpush.bf16.msra.mxu0 %v1480
    %1530 = vmatpush.bf16.msra.mxu0 %v1479
    %1531 = vmatpush.bf16.msra.mxu0 %v1478
    %1532 = vmatpush.bf16.msra.mxu0 %v1477
    %1533 = vmatmul.bf16.gmra.mxu0 %v1326
    %v1534 = vpop.f32.mrf.mxu0
    %v1535 = vadd.f32 %v1379, %v1534
    %v1536 = vpop.f32.mrf.mxu0
    %1537 = vdwg.mxu0
    %1538 = vmatpush.bf16.msra.mxu0 %v1492
    %1539 = vmatpush.bf16.msra.mxu0 %v1491
    %1540 = vmatpush.bf16.msra.mxu0 %v1490
    %1541 = vmatpush.bf16.msra.mxu0 %v1489
    %1542 = vmatpush.bf16.msra.mxu0 %v1488
    %1543 = vmatpush.bf16.msra.mxu0 %v1487
    %1544 = vmatpush.bf16.msra.mxu0 %v1486
    %1545 = vmatpush.bf16.msra.mxu0 %v1485
    %1546 = vmatmul.bf16.gmra.mxu0 %v1327
    %v1547 = vpop.f32.mrf.mxu0
    %v1548 = vadd.f32 %v1535, %v1547
    %v1549 = vpop.f32.mrf.mxu0
    %1550 = vdwg.mxu0
    %1551 = vmatpush.bf16.msra.mxu0 %v1500
    %1552 = vmatpush.bf16.msra.mxu0 %v1499
    %1553 = vmatpush.bf16.msra.mxu0 %v1498
    %1554 = vmatpush.bf16.msra.mxu0 %v1497
    %1555 = vmatpush.bf16.msra.mxu0 %v1496
    %1556 = vmatpush.bf16.msra.mxu0 %v1495
    %1557 = vmatpush.bf16.msra.mxu0 %v1494
    %1558 = vmatpush.bf16.msra.mxu0 %v1493
    %1559 = vmatmul.bf16.gmra.mxu0 %v1328
    %v1560 = vpop.f32.mrf.mxu0
    %v1561 = vadd.f32 %v1548, %v1560
    %v1562 = vpop.f32.mrf.mxu0
    %1563 = vdwg.mxu0
    %v1564 = vmax.f32 %v1561, 0.0
    %v1565 = vpack.c.bf16 %v1564, %v1564
    %v1566 = vld [vmem:[%s5] sm:$0xf]
    %v1567 = vld [vmem:[%s5 + $0x4] sm:$0xf]
    %v1568 = vld [vmem:[%s5 + $0x8] sm:$0xf]
    %v1569 = vld [vmem:[%s5 + $0xc] sm:$0xf]
    %v1570 = vld [vmem:[%s5 + $0x10] sm:$0xf]
    %v1571 = vld [vmem:[%s5 + $0x14] sm:$0xf]
    %v1572 = vld [vmem:[%s5 + $0x18] sm:$0xf]
    %v1573 = vld [vmem:[%s5 + $0x1c] sm:$0xf]
    %v1574 = vld [vmem:[%s5 + $0x20] sm:$0xf]
    %v1575 = vld [vmem:[%s5 + $0x24] sm:$0xf]
    %v1576 = vld [vmem:[%s5 + $0x28] sm:$0xf]
    %v1577 = vld [vmem:[%s5 + $0x2c] sm:$0xf]
    %v1578 = vld [vmem:[%s5 + $0x30] sm:$0xf]
    %v1579 = vld [vmem:[%s5 + $0x34] sm:$0xf]
    %v1580 = vld [vmem:[%s5 + $0x38] sm:$0xf]
    %v1581 = vld [vmem:[%s5 + $0x3c] sm:$0xf]
    %v1582 = vld [vmem:[%s6] sm:$0x1]
    %v1584 = vperm.slane %v1582, 0
    %v1602 = vunpack.c.l.b16 %v1566
    %v1603 = vunpack.c.l.b16 %v1567
    %v1604 = vunpack.c.l.b16 %v1568
    %v1605 = vunpack.c.l.b16 %v1569
    %v1606 = vunpack.c.l.b16 %v1570
    %v1607 = vunpack.c.l.b16 %v1571
    %v1608 = vunpack.c.l.b16 %v1572
    %v1609 = vunpack.c.l.b16 %v1573
    %v1610 = vunpack.c.l.b16 %v1574
    %v1611 = vunpack.c.l.b16 %v1575
    %v1612 = vunpack.c.l.b16 %v1576
    %v1613 = vunpack.c.l.b16 %v1577
    %v1614 = vunpack.c.l.b16 %v1578
    %v1615 = vunpack.c.l.b16 %v1579
    %v1616 = vunpack.c.l.b16 %v1580
    %v1617 = vunpack.c.l.b16 %v1581
    %v1618 = vpack.c.b16 %v1603, %v1602
    %v1619 = vpack.c.b16 %v1605, %v1604
    %v1620 = vpack.c.b16 %v1607, %v1606
    %v1621 = vpack.c.b16 %v1609, %v1608
    %v1622 = vpack.c.b16 %v1611, %v1610
    %v1623 = vpack.c.b16 %v1613, %v1612
    %v1624 = vpack.c.b16 %v1615, %v1614
    %v1625 = vpack.c.b16 %v1617, %v1616
    %1634 = vmatpush.bf16.msra.mxu0 %v1625
    %1635 = vmatpush.bf16.msra.mxu0 %v1624
    %1636 = vmatpush.bf16.msra.mxu0 %v1623
    %1637 = vmatpush.bf16.msra.mxu0 %v1622
    %1638 = vmatpush.bf16.msra.mxu0 %v1621
    %1639 = vmatpush.bf16.msra.mxu0 %v1620
    %1640 = vmatpush.bf16.msra.mxu0 %v1619
    %1641 = vmatpush.bf16.msra.mxu0 %v1618
    %1642 = vmatmul.bf16.gmra.mxu0 %v1565
    %v1643 = vpop.f32.mrf.mxu0
    %v1644 = vadd.f32 %v1584, %v1643
    %v1645 = vpop.f32.mrf.mxu0
    %1646 = vdwg.mxu0
    %1647 = vst [vmem:[#allocation5] sm:$0xff] %v1644
    // Predicated region
    $region34: #{mlp_mnist_forward.1} parent=1 // pred_check
      _
    $region35: #{mlp_mnist_forward.1} parent=1 // pred_check_branch
      %1649 = sbr.rel (0) target = $region37
    $region36: #{mlp_mnist_forward.1} parent=1 // pred_region
      %1651 = vsyncadd [#allocation4], 0
      %s1653 = sshll.u32 [#allocation5], 4
      %s1654 = int_to_ptr.vmem [resolvable:$true] %s1653
      %s1655 = sshll.u32 %s7, 4
      %s1656 = int_to_ptr.hbm [resolvable:$true] %s1655
      %1658 = dma.vmem_to_hbm [thread:$0]  %s1654, 128, %s1656, [#allocation4]
    $region37: #{mlp_mnist_forward.1} parent=1 // pred_fallthru
      _
    // Predicated region
    $region38: #{mlp_mnist_forward.1} parent=1 // pred_check
      _
    $region39: #{mlp_mnist_forward.1} parent=1 // pred_check_branch
      %1660 = sbr.rel (0) target = $region41
    $region40: #{mlp_mnist_forward.1} parent=1 // pred_region
      %1662 = dma.done [#allocation4], 128
    $region41: #{mlp_mnist_forward.1} parent=1 // pred_fallthru
      _
    %1663 = vsyncpa [#allocation3], 1
    %1664 = vsyncpa [#allocation4], 1

</llo_original>
